<compile_context>
chip_gen: v7x
topology: tpu7x:2x2x1
jax: 0.10.0
libtpu: 0.0.40
codegen_flags: <defaults>
</compile_context>

<pallas_src>
import functools

import jax
import jax.numpy as jnp
from jax.experimental import pallas as pl
from jax.experimental.pallas import tpu as pltpu

HIDDEN = 128


def _mlp_rowtile_kernel(x_ref, w1_ref, b1_ref, w2_ref, b2_ref, o_ref,
                        *, compute_dtype):
    # x_ref:  (TM, E)     activation tile (streamed)
    # w1_ref: (E, 128)    first-layer weight (resident)
    # b1_ref: (1, 128)    first-layer bias   (resident)
    # w2_ref: (1, 128)    second-layer weight, row form (resident)
    # b2_ref: (1,) SMEM   second-layer bias scalar
    # o_ref:  (1, TM)     lane-dense per-row outputs
    x = x_ref[...].astype(compute_dtype)
    w1 = w1_ref[...].astype(compute_dtype)
    # MXU matmul with f32 accumulation.
    h = jnp.dot(x, w1, preferred_element_type=jnp.float32)        # (TM, 128) f32
    h = jnp.maximum(h + b1_ref[...], 0.0)                         # f32 epilogue (ReLU)
    # Linear(128 -> 1) as VPU mul + lane reduce (keeps the MXU out of an N=1 matmul).
    out_rows = jnp.sum(h * w2_ref[...], axis=-1) + b2_ref[0]      # (TM,)
    o_ref[...] = out_rows[None, :].astype(o_ref.dtype)            # lane-dense store


def _pick_row_tile(rows):
    # Lane-dense output needs TM % 128 == 0; larger tiles pipeline better.
    for cand in (1024, 512, 256):
        if rows >= cand:
            return cand
    return 128


def mlp_pallas(x2d, w1, b1, w2_row, b2, *, tm=None, compute_dtype=jnp.float32):
    """(rows, E) -> (rows,) via Linear(E,128) -> ReLU -> Linear(128,1)."""
    rows, embed = x2d.shape
    hidden = w1.shape[1]

    if tm is None:
        tm = _pick_row_tile(rows)
    # Pad the row dim to a multiple of TM (copies only when a tail exists).
    rows_p = ((rows + tm - 1) // tm) * tm
    if rows_p != rows:
        x2d = jnp.pad(x2d, ((0, rows_p - rows), (0, 0)))
    num_tiles = rows_p // tm

    b1 = b1.reshape(1, hidden).astype(jnp.float32)
    w2_row = w2_row.reshape(1, hidden).astype(jnp.float32)
    b2 = jnp.asarray(b2, jnp.float32).reshape(1)

    kernel = functools.partial(_mlp_rowtile_kernel, compute_dtype=compute_dtype)
    out = pl.pallas_call(
        kernel,
        out_shape=jax.ShapeDtypeStruct((num_tiles, tm), jnp.float32),
        grid=(num_tiles,),
        in_specs=[
            pl.BlockSpec((tm, embed), lambda i: (i, 0)),       # streamed x tiles
            pl.BlockSpec((embed, hidden), lambda i: (0, 0)),   # resident weights/biases
            pl.BlockSpec((1, hidden), lambda i: (0, 0)),
            pl.BlockSpec((1, hidden), lambda i: (0, 0)),
            pl.BlockSpec(memory_space=pltpu.MemorySpace.SMEM),  # b2 scalar
        ],
        out_specs=pl.BlockSpec((1, tm), lambda i: (i, 0)),
        compiler_params=pltpu.CompilerParams(
            # Row loop is embarrassingly parallel -> shard across v7x's 2 TCs.
            dimension_semantics=("parallel",),
            # Headroom sized for v7x's 64 MiB physical VMEM.
            vmem_limit_bytes=32 * 1024 * 1024,
        ),
    )(x2d, w1, b1, w2_row, b2)
    return out.reshape(rows_p)[:rows]


def pretrain_model_stub(x):
    # TODO(synk): `pretrain_model` is an externally supplied backbone with no
    # architecture defined in this module; treated as identity here.
    return x


def downstream_cage_forward(x, params, crop, *, compute_dtype=jnp.float32):
    """x: (B, S, E) float32 -> (B, S - 2*crop, 1) float32."""
    x = pretrain_model_stub(x)
    B, S, E = x.shape
    # Run the MLP over all B*S rows (reshape is metadata-only, no HBM copy) and
    # crop the tiny per-row output afterwards. This reads each input element
    # once, vs slice+reshape-in-the-wrapper which costs a full extra HBM pass.
    rows_out = mlp_pallas(x.reshape(B * S, E), params["w1"], params["b1"],
                          params["w2_row"], params["b2"],
                          compute_dtype=compute_dtype)             # (B*S,)
    out = rows_out.reshape(B, S)[:, crop:S - crop]
    return out[..., None]


def init_params(key, embed_dim, hidden=HIDDEN):
    k1, k2, k3, k4 = jax.random.split(key, 4)
    # Deterministic synthetic init (uniform, PyTorch-Linear-like bounds).
    lim1 = 1.0 / (embed_dim ** 0.5)
    lim2 = 1.0 / (hidden ** 0.5)
    return {
        "w1": jax.random.uniform(k1, (embed_dim, hidden), jnp.float32, -lim1, lim1),
        "b1": jax.random.uniform(k2, (hidden,), jnp.float32, -lim1, lim1),
        "w2_row": jax.random.uniform(k3, (1, hidden), jnp.float32, -lim2, lim2),
        "b2": jax.random.uniform(k4, (), jnp.float32, -lim2, lim2),
    }


def reference_forward(x, params, crop):
    xc = x[:, crop:-crop, :]
    h = jnp.maximum(xc @ params["w1"] + params["b1"], 0.0)
    return h @ params["w2_row"].T + params["b2"]


if __name__ == "__main__":
    key = jax.random.PRNGKey(0)
    k_in, k_par, k_in2, k_par2 = jax.random.split(key, 4)

    # Case 1: small shape consistent with the module: (B, S, E) = (2, 16, 32), crop=2.
    B, S, E, crop = 2, 16, 32, 2
    x = jax.random.normal(k_in, (B, S, E), dtype=jnp.float32)
    params = init_params(k_par, E)

    out = jax.block_until_ready(downstream_cage_forward(x, params, crop))
    ref = reference_forward(x, params, crop)
    assert out.shape == (B, S - 2 * crop, 1), out.shape
    assert jnp.allclose(out, ref, atol=2e-5, rtol=2e-5), \
        float(jnp.max(jnp.abs(out - ref)))

    # Case 1b: bf16 MXU path (v6e/v7x) with f32 accumulation -> looser tolerance.
    out_bf16 = jax.block_until_ready(
        downstream_cage_forward(x, params, crop, compute_dtype=jnp.bfloat16))
    assert jnp.allclose(out_bf16, ref, atol=5e-2, rtol=5e-2)

    # Case 2: exercises a multi-tile grid and the padded row tail.
    B2, S2, E2, crop2 = 1, 300, 64, 10
    x2 = jax.random.normal(k_in2, (B2, S2, E2), dtype=jnp.float32)
    params2 = init_params(k_par2, E2)
    out2 = jax.block_until_ready(downstream_cage_forward(x2, params2, crop2))
    ref2 = reference_forward(x2, params2, crop2)
    assert out2.shape == (B2, S2 - 2 * crop2, 1), out2.shape
    assert jnp.allclose(out2, ref2, atol=2e-5, rtol=2e-5), \
        float(jnp.max(jnp.abs(out2 - ref2)))

    print("KERNEL_OK")
</pallas_src>

<mosaic_0001>
module attributes {stable_mosaic.version = 11 : i64} {
  func.func @_mlp_rowtile_kernel(%arg0: i32, %arg1: memref<128x32xf32, #tpu.memory_space<vmem>>, %arg2: memref<32x128xf32, #tpu.memory_space<vmem>>, %arg3: memref<1x128xf32, #tpu.memory_space<vmem>>, %arg4: memref<1x128xf32, #tpu.memory_space<vmem>>, %arg5: memref<1xf32, #tpu.memory_space<smem>>, %arg6: memref<1x128xf32, #tpu.memory_space<vmem>>) attributes {dimension_semantics = [#tpu.dimension_semantics<parallel>], iteration_bounds = array<i64: 1>, scalar_prefetch = 0 : i64, scratch_operands = 0 : i64, tpu.core_type = #tpu.core_type<tc>, window_params = [{transform_indices = @transform_0, window_bounds = array<i64: 128, 32>}, {pipeline_mode = #tpu.pipeline_mode<synchronous>, transform_indices = @transform_1, window_bounds = array<i64: 32, 128>}, {pipeline_mode = #tpu.pipeline_mode<synchronous>, transform_indices = @transform_2, window_bounds = array<i64: 1, 128>}, {pipeline_mode = #tpu.pipeline_mode<synchronous>, transform_indices = @transform_3, window_bounds = array<i64: 1, 128>}, {transform_indices = @transform_4, window_bounds = array<i64: 1>}, {transform_indices = @transform_5, window_bounds = array<i64: 1, 128>}]} {
    %c0 = arith.constant 0 : index
    %c0_0 = arith.constant 0 : index
    %0 = vector.load %arg1[%c0, %c0_0] : memref<128x32xf32, #tpu.memory_space<vmem>>, vector<128x32xf32>
    %c0_1 = arith.constant 0 : index
    %c0_2 = arith.constant 0 : index
    %1 = vector.load %arg2[%c0_1, %c0_2] : memref<32x128xf32, #tpu.memory_space<vmem>>, vector<32x128xf32>
    %cst = arith.constant dense<0.000000e+00> : vector<128x128xf32>
    %2 = tpu.matmul %0, %1, %cst {dimension_numbers = #tpu.dot_dimension_numbers<[1], [0], [0], [1], [0, 0, 1, 1], [], []>} : vector<128x32xf32>, vector<32x128xf32>, vector<128x128xf32> -> vector<128x128xf32>
    %c0_3 = arith.constant 0 : index
    %c0_4 = arith.constant 0 : index
    %3 = vector.load %arg3[%c0_3, %c0_4] : memref<1x128xf32, #tpu.memory_space<vmem>>, vector<1x128xf32>
    %4 = vector.broadcast %3 : vector<1x128xf32> to vector<128x128xf32>
    %5 = arith.addf %2, %4 : vector<128x128xf32>
    %cst_5 = arith.constant 0.000000e+00 : f32
    %6 = vector.broadcast %cst_5 : f32 to vector<128x128xf32>
    %7 = arith.maximumf %5, %6 : vector<128x128xf32>
    %c0_6 = arith.constant 0 : index
    %c0_7 = arith.constant 0 : index
    %8 = vector.load %arg4[%c0_6, %c0_7] : memref<1x128xf32, #tpu.memory_space<vmem>>, vector<1x128xf32>
    %9 = vector.broadcast %8 : vector<1x128xf32> to vector<128x128xf32>
    %10 = arith.mulf %7, %9 : vector<128x128xf32>
    %cst_8 = arith.constant dense<0.000000e+00> : vector<128xf32>
    %11 = vector.multi_reduction <add>, %10, %cst_8 [1] : vector<128x128xf32> to vector<128xf32>
    %c0_9 = arith.constant 0 : index
    %12 = memref.load %arg5[%c0_9] : memref<1xf32, #tpu.memory_space<smem>>
    %13 = vector.broadcast %12 : f32 to vector<128xf32>
    %14 = arith.addf %11, %13 : vector<128xf32>
    %15 = vector.shape_cast %14 : vector<128xf32> to vector<1x128xf32>
    %c0_10 = arith.constant 0 : index
    %c0_11 = arith.constant 0 : index
    %16 = vector.load %arg6[%c0_10, %c0_11] : memref<1x128xf32, #tpu.memory_space<vmem>>, vector<1x128xf32>
    tpu.vector_store %arg6[%c0_10, %c0_11], %15 {strides = array<i32>} : memref<1x128xf32, #tpu.memory_space<vmem>>, vector<1x128xf32>,
    return
  }
  func.func @transform_0(%arg0: i32) -> (i32, i32) {
    %c0_i32 = arith.constant 0 : i32
    %c0_i32_0 = arith.constant 0 : i32
    return %arg0, %c0_i32 : i32, i32
  }
  func.func @transform_1(%arg0: i32) -> (i32, i32) {
    %c0_i32 = arith.constant 0 : i32
    %c0_i32_0 = arith.constant 0 : i32
    %c0_i32_1 = arith.constant 0 : i32
    return %c0_i32, %c0_i32_0 : i32, i32
  }
  func.func @transform_2(%arg0: i32) -> (i32, i32) {
    %c0_i32 = arith.constant 0 : i32
    %c0_i32_0 = arith.constant 0 : i32
    %c0_i32_1 = arith.constant 0 : i32
    return %c0_i32, %c0_i32_0 : i32, i32
  }
  func.func @transform_3(%arg0: i32) -> (i32, i32) {
    %c0_i32 = arith.constant 0 : i32
    %c0_i32_0 = arith.constant 0 : i32
    %c0_i32_1 = arith.constant 0 : i32
    return %c0_i32, %c0_i32_0 : i32, i32
  }
  func.func @transform_4(%arg0: i32) -> i32 {
    %c0_i32 = arith.constant 0 : i32
    %c0_i32_0 = arith.constant 0 : i32
    return %c0_i32 : i32
  }
  func.func @transform_5(%arg0: i32) -> (i32, i32) {
    %c0_i32 = arith.constant 0 : i32
    %c0_i32_0 = arith.constant 0 : i32
    return %arg0, %c0_i32 : i32, i32
  }
}

</mosaic_0001>

<llo_original>
// kernel: tpu_custom_call.1
$region0: #{tpu_custom_call.1}
  #allocation0 [shape = 'u32[]', space=smem, size = 0x4, offset = 0x4, fixed_abs, tag = 'smem constant byte address 0x4 - core index']
  #allocation1 [shape = 'u32[144,128]{1,0:T(1,128)}', space=vmem, size = 0x12000, scoped, tag = 'internal scratch']
  #allocation2 [shape = 'f32[1]{0:T(128)S(6)}', space=smem, size = 0x200, scoped, tag = 'scoped memory for tpu_custom_call.1']
  %s0 = inlined_call_operand.vmem [shape: f32[128,32], index: 0, kind: input, shape index: {}]
  %s1 = inlined_call_operand.vmem [shape: f32[32,128], index: 1, kind: input, shape index: {}]
  %s2 = inlined_call_operand.vmem [shape: f32[1,128], index: 2, kind: input, shape index: {}]
  %s3 = inlined_call_operand.vmem [shape: f32[1,128], index: 3, kind: input, shape index: {}]
  %s4 = inlined_call_operand.<no memory space> [shape: f32[1], index: 4, kind: input, shape index: {}]
  %s5 = inlined_call_operand.hbm [shape: f32[1,128], index: 5, kind: output, shape index: {}]
  %s6 = sld [smem:[#allocation0]]
  $region30: #{tpu_custom_call.1} parent=0
    _
  %s8 = ssub.s32 1, %s6
  %s9 = scalar_select 0, %s8, %s6
  %10 = sst [smem:[#allocation2]] %s4
  $region1: #{tpu_custom_call.1} parent=0
    #allocation3 [shape = 'u8[512]{0}', space=vmem, size = 0x400, scoped, tag = 'output window, operand 0, single buffered']
    #allocation4 [shape = 's32[1]{0}', space=sflag, size = 0x4, scoped, tag = 'scoped memory for tpu_custom_call.1']
    %11 = vsyncpa [#allocation4], 0
    // Predicated region
    $region2: #{tpu_custom_call.1} parent=1 // pred_check
      _
    $region3: #{tpu_custom_call.1} parent=1 // pred_check_branch
      %13 = sbr.rel (0) target = $region5
    $region4: #{tpu_custom_call.1} parent=1 // pred_region
      _
    $region5: #{tpu_custom_call.1} parent=1 // pred_fallthru
      _
    // Predicated region
    $region6: #{tpu_custom_call.1} parent=1 // pred_check
      _
    $region7: #{tpu_custom_call.1} parent=1 // pred_check_branch
      %15 = sbr.rel (0) target = $region9
    $region8: #{tpu_custom_call.1} parent=1 // pred_region
      _
    $region9: #{tpu_custom_call.1} parent=1 // pred_fallthru
      _
    // Predicated region
    $region10: #{tpu_custom_call.1} parent=1 // pred_check
      _
    $region11: #{tpu_custom_call.1} parent=1 // pred_check_branch
      %17 = sbr.rel (0) target = $region13
    $region12: #{tpu_custom_call.1} parent=1 // pred_region
      _
    $region13: #{tpu_custom_call.1} parent=1 // pred_fallthru
      _
    // Predicated region
    $region14: #{tpu_custom_call.1} parent=1 // pred_check
      _
    $region15: #{tpu_custom_call.1} parent=1 // pred_check_branch
      %19 = sbr.rel (0) target = $region17
    $region16: #{tpu_custom_call.1} parent=1 // pred_region
      _
    $region17: #{tpu_custom_call.1} parent=1 // pred_fallthru
      _
    // Predicated region
    $region18: #{tpu_custom_call.1} parent=1 // pred_check
      _
    $region19: #{tpu_custom_call.1} parent=1 // pred_check_branch
      %21 = sbr.rel (0) target = $region21
    $region20: #{tpu_custom_call.1} parent=1 // pred_region
      _
    $region21: #{tpu_custom_call.1} parent=1 // pred_fallthru
      _
    %v22 = vld [vmem:[%s0] sm:$0xff]
    %v23 = vld [vmem:[%s0 + $0x8] sm:$0xff]
    %v24 = vld [vmem:[%s0 + $0x10] sm:$0xff]
    %v25 = vld [vmem:[%s0 + $0x18] sm:$0xff]
    %v26 = vld [vmem:[%s0 + $0x20] sm:$0xff]
    %v27 = vld [vmem:[%s0 + $0x28] sm:$0xff]
    %v28 = vld [vmem:[%s0 + $0x30] sm:$0xff]
    %v29 = vld [vmem:[%s0 + $0x38] sm:$0xff]
    %v30 = vld [vmem:[%s0 + $0x40] sm:$0xff]
    %v31 = vld [vmem:[%s0 + $0x48] sm:$0xff]
    %v32 = vld [vmem:[%s0 + $0x50] sm:$0xff]
    %v33 = vld [vmem:[%s0 + $0x58] sm:$0xff]
    %v34 = vld [vmem:[%s0 + $0x60] sm:$0xff]
    %v35 = vld [vmem:[%s0 + $0x68] sm:$0xff]
    %v36 = vld [vmem:[%s0 + $0x70] sm:$0xff]
    %v37 = vld [vmem:[%s0 + $0x78] sm:$0xff]
    %v38 = vld [vmem:[%s1] sm:$0xff]
    %v39 = vld [vmem:[%s1 + $0x8] sm:$0xff]
    %v40 = vld [vmem:[%s1 + $0x10] sm:$0xff]
    %v41 = vld [vmem:[%s1 + $0x18] sm:$0xff]
    %v42 = vld [vmem:[%s2] sm:$0x1]
    %v44 = vlaneseq
    %v45 = vshrl.u32 %v44, 7
    %v46 = vsub.s32 0, %v45
    %v47 = vrot.slane %v42, %v46
    %vm49 = vcmask 261120
    %v51 = vsel %vm49, %v22, 0
    %v54 = vsel %vm49, %v23, 0
    %v57 = vsel %vm49, %v24, 0
    %v60 = vsel %vm49, %v25, 0
    %v63 = vsel %vm49, %v26, 0
    %v66 = vsel %vm49, %v27, 0
    %v69 = vsel %vm49, %v28, 0
    %v72 = vsel %vm49, %v29, 0
    %v75 = vsel %vm49, %v30, 0
    %v78 = vsel %vm49, %v31, 0
    %v81 = vsel %vm49, %v32, 0
    %v84 = vsel %vm49, %v33, 0
    %v87 = vsel %vm49, %v34, 0
    %v90 = vsel %vm49, %v35, 0
    %v93 = vsel %vm49, %v36, 0
    %v96 = vsel %vm49, %v37, 0
    %98 = vmatprep.subr.mxu0 0.0
    %99 = vmatpush1.msra.mxu0 %v38
    %100 = vmatprep.subr.mxu0 0.0
    %101 = vmatpush1.msra.mxu0 %v39
    %102 = vmatprep.subr.mxu0 0.0
    %103 = vmatpush1.msra.mxu0 %v40
    %104 = vmatprep.subr.mxu0 0.0
    %105 = vmatpush1.msra.mxu0 %v41
    %106 = vmatprep.subr.mxu0 0.0
    %107 = vmatpush1.msra.mxu0 0.0
    %108 = vmatprep.subr.mxu0 0.0
    %109 = vmatpush1.msra.mxu0 0.0
    %110 = vmatprep.subr.mxu0 0.0
    %111 = vmatpush1.msra.mxu0 0.0
    %112 = vmatprep.subr.mxu0 0.0
    %113 = vmatpush1.msra.mxu0 0.0
    %114 = vmatprep.subr.mxu0 0.0
    %115 = vmatpush1.msra.mxu0 0.0
    %116 = vmatprep.subr.mxu0 0.0
    %117 = vmatpush1.msra.mxu0 0.0
    %118 = vmatprep.subr.mxu0 0.0
    %119 = vmatpush1.msra.mxu0 0.0
    %120 = vmatprep.subr.mxu0 0.0
    %121 = vmatpush1.msra.mxu0 0.0
    %122 = vmatprep.subr.mxu0 0.0
    %123 = vmatpush1.msra.mxu0 0.0
    %124 = vmatprep.subr.mxu0 0.0
    %125 = vmatpush1.msra.mxu0 0.0
    %126 = vmatprep.subr.mxu0 0.0
    %127 = vmatpush1.msra.mxu0 0.0
    %128 = vmatprep.subr.mxu0 0.0
    %129 = vmatpush1.msra.mxu0 0.0
    %130 = vmatprep.subr.mxu0 0.0
    %131 = vmatpush1.msra.mxu0 0.0
    %132 = vmatprep.subr.mxu0 0.0
    %133 = vmatpush1.msra.mxu0 0.0
    %134 = vmatprep.subr.mxu0 0.0
    %135 = vmatpush1.msra.mxu0 0.0
    %136 = vmatprep.subr.mxu0 0.0
    %137 = vmatpush1.msra.mxu0 0.0
    %138 = vmatprep.subr.mxu0 0.0
    %139 = vmatpush1.msra.mxu0 0.0
    %140 = vmatprep.subr.mxu0 0.0
    %141 = vmatpush1.msra.mxu0 0.0
    %142 = vmatprep.subr.mxu0 0.0
    %143 = vmatpush1.msra.mxu0 0.0
    %144 = vmatprep.subr.mxu0 0.0
    %145 = vmatpush1.msra.mxu0 0.0
    %146 = vmatprep.subr.mxu0 0.0
    %147 = vmatpush1.msra.mxu0 0.0
    %148 = vmatprep.subr.mxu0 0.0
    %149 = vmatpush1.msra.mxu0 0.0
    %150 = vmatprep.subr.mxu0 0.0
    %151 = vmatpush1.msra.mxu0 0.0
    %152 = vmatprep.subr.mxu0 0.0
    %153 = vmatpush1.msra.mxu0 0.0
    %154 = vmatprep.subr.mxu0 0.0
    %155 = vmatpush1.msra.mxu0 0.0
    %156 = vmatprep.subr.mxu0 0.0
    %157 = vmatpush1.msra.mxu0 0.0
    %158 = vmatprep.subr.mxu0 0.0
    %159 = vmatpush1.msra.mxu0 0.0
    %160 = vmatprep.subr.mxu0 0.0
    %161 = vmatpush1.msra.mxu0 0.0
    %162 = vmatprep.mubr.f32.mxu0 0.0
    %163 = vmatmul.mubr.f32.gmra.mrb[0].mxu0 %v51
    %v164 = vpop.f32.mrb[0].mxu0
    %v165 = vadd.f32 %v47, %v164
    %v166 = vpop.f32.mrb[0].mxu0
    %167 = vmatprep.mubr.f32.mxu0 0.0
    %168 = vmatmul.mubr.f32.gmra.mrb[0].mxu0 %v54
    %v169 = vpop.f32.mrb[0].mxu0
    %v170 = vadd.f32 %v47, %v169
    %v171 = vpop.f32.mrb[0].mxu0
    %172 = vmatprep.mubr.f32.mxu0 0.0
    %173 = vmatmul.mubr.f32.gmra.mrb[0].mxu0 %v57
    %v174 = vpop.f32.mrb[0].mxu0
    %v175 = vadd.f32 %v47, %v174
    %v176 = vpop.f32.mrb[0].mxu0
    %177 = vmatprep.mubr.f32.mxu0 0.0
    %178 = vmatmul.mubr.f32.gmra.mrb[0].mxu0 %v60
    %v179 = vpop.f32.mrb[0].mxu0
    %v180 = vadd.f32 %v47, %v179
    %v181 = vpop.f32.mrb[0].mxu0
    %182 = vmatprep.mubr.f32.mxu0 0.0
    %183 = vmatmul.mubr.f32.gmra.mrb[0].mxu0 %v63
    %v184 = vpop.f32.mrb[0].mxu0
    %v185 = vadd.f32 %v47, %v184
    %v186 = vpop.f32.mrb[0].mxu0
    %187 = vmatprep.mubr.f32.mxu0 0.0
    %188 = vmatmul.mubr.f32.gmra.mrb[0].mxu0 %v66
    %v189 = vpop.f32.mrb[0].mxu0
    %v190 = vadd.f32 %v47, %v189
    %v191 = vpop.f32.mrb[0].mxu0
    %192 = vmatprep.mubr.f32.mxu0 0.0
    %193 = vmatmul.mubr.f32.gmra.mrb[0].mxu0 %v69
    %v194 = vpop.f32.mrb[0].mxu0
    %v195 = vadd.f32 %v47, %v194
    %v196 = vpop.f32.mrb[0].mxu0
    %197 = vmatprep.mubr.f32.mxu0 0.0
    %198 = vmatmul.mubr.f32.gmra.mrb[0].mxu0 %v72
    %v199 = vpop.f32.mrb[0].mxu0
    %v200 = vadd.f32 %v47, %v199
    %v201 = vpop.f32.mrb[0].mxu0
    %202 = vmatprep.mubr.f32.mxu0 0.0
    %203 = vmatmul.mubr.f32.gmra.mrb[0].mxu0 %v75
    %v204 = vpop.f32.mrb[0].mxu0
    %v205 = vadd.f32 %v47, %v204
    %v206 = vpop.f32.mrb[0].mxu0
    %207 = vmatprep.mubr.f32.mxu0 0.0
    %208 = vmatmul.mubr.f32.gmra.mrb[0].mxu0 %v78
    %v209 = vpop.f32.mrb[0].mxu0
    %v210 = vadd.f32 %v47, %v209
    %v211 = vpop.f32.mrb[0].mxu0
    %212 = vmatprep.mubr.f32.mxu0 0.0
    %213 = vmatmul.mubr.f32.gmra.mrb[0].mxu0 %v81
    %v214 = vpop.f32.mrb[0].mxu0
    %v215 = vadd.f32 %v47, %v214
    %v216 = vpop.f32.mrb[0].mxu0
    %217 = vmatprep.mubr.f32.mxu0 0.0
    %218 = vmatmul.mubr.f32.gmra.mrb[0].mxu0 %v84
    %v219 = vpop.f32.mrb[0].mxu0
    %v220 = vadd.f32 %v47, %v219
    %v221 = vpop.f32.mrb[0].mxu0
    %222 = vmatprep.mubr.f32.mxu0 0.0
    %223 = vmatmul.mubr.f32.gmra.mrb[0].mxu0 %v87
    %v224 = vpop.f32.mrb[0].mxu0
    %v225 = vadd.f32 %v47, %v224
    %v226 = vpop.f32.mrb[0].mxu0
    %227 = vmatprep.mubr.f32.mxu0 0.0
    %228 = vmatmul.mubr.f32.gmra.mrb[0].mxu0 %v90
    %v229 = vpop.f32.mrb[0].mxu0
    %v230 = vadd.f32 %v47, %v229
    %v231 = vpop.f32.mrb[0].mxu0
    %232 = vmatprep.mubr.f32.mxu0 0.0
    %233 = vmatmul.mubr.f32.gmra.mrb[0].mxu0 %v93
    %v234 = vpop.f32.mrb[0].mxu0
    %v235 = vadd.f32 %v47, %v234
    %v236 = vpop.f32.mrb[0].mxu0
    %237 = vmatprep.mubr.f32.mxu0 0.0
    %238 = vmatmul.mubr.f32.gmra.mrb[0].mxu0 %v96
    %v239 = vpop.f32.mrb[0].mxu0
    %v240 = vadd.f32 %v47, %v239
    %v241 = vpop.f32.mrb[0].mxu0
    %242 = vdwg.mxu0
    %v243 = vmax.f32 %v165, 0.0
    %v244 = vmax.f32 %v170, 0.0
    %v245 = vmax.f32 %v175, 0.0
    %v246 = vmax.f32 %v180, 0.0
    %v247 = vmax.f32 %v185, 0.0
    %v248 = vmax.f32 %v190, 0.0
    %v249 = vmax.f32 %v195, 0.0
    %v250 = vmax.f32 %v200, 0.0
    %v251 = vmax.f32 %v205, 0.0
    %v252 = vmax.f32 %v210, 0.0
    %v253 = vmax.f32 %v215, 0.0
    %v254 = vmax.f32 %v220, 0.0
    %v255 = vmax.f32 %v225, 0.0
    %v256 = vmax.f32 %v230, 0.0
    %v257 = vmax.f32 %v235, 0.0
    %v258 = vmax.f32 %v240, 0.0
    %v259 = vld [vmem:[%s3] sm:$0x1]
    %v261 = vlaneseq
    %v262 = vshrl.u32 %v261, 7
    %v263 = vsub.s32 0, %v262
    %v264 = vrot.slane %v259, %v263
    %v266 = vmul.f32 %v243, %v264
    %v267 = vmul.f32 %v244, %v264
    %v268 = vmul.f32 %v245, %v264
    %v269 = vmul.f32 %v246, %v264
    %v270 = vmul.f32 %v247, %v264
    %v271 = vmul.f32 %v248, %v264
    %v272 = vmul.f32 %v249, %v264
    %v273 = vmul.f32 %v250, %v264
    %v274 = vmul.f32 %v251, %v264
    %v275 = vmul.f32 %v252, %v264
    %v276 = vmul.f32 %v253, %v264
    %v277 = vmul.f32 %v254, %v264
    %v278 = vmul.f32 %v255, %v264
    %v279 = vmul.f32 %v256, %v264
    %v280 = vmul.f32 %v257, %v264
    %v281 = vmul.f32 %v258, %v264
    %282 = vadd.xlane.f32.xlu0 %v266
    %v283 = vpop.xlane.xlu0 %282
    %284 = vadd.xlane.f32.xlu0 %v267
    %v285 = vpop.xlane.xlu0 %284
    %286 = vadd.xlane.f32.xlu0 %v268
    %v287 = vpop.xlane.xlu0 %286
    %288 = vadd.xlane.f32.xlu0 %v269
    %v289 = vpop.xlane.xlu0 %288
    %290 = vadd.xlane.f32.xlu0 %v270
    %v291 = vpop.xlane.xlu0 %290
    %292 = vadd.xlane.f32.xlu0 %v271
    %v293 = vpop.xlane.xlu0 %292
    %294 = vadd.xlane.f32.xlu0 %v272
    %v295 = vpop.xlane.xlu0 %294
    %296 = vadd.xlane.f32.xlu0 %v273
    %v297 = vpop.xlane.xlu0 %296
    %298 = vadd.xlane.f32.xlu0 %v274
    %v299 = vpop.xlane.xlu0 %298
    %300 = vadd.xlane.f32.xlu0 %v275
    %v301 = vpop.xlane.xlu0 %300
    %302 = vadd.xlane.f32.xlu0 %v276
    %v303 = vpop.xlane.xlu0 %302
    %304 = vadd.xlane.f32.xlu0 %v277
    %v305 = vpop.xlane.xlu0 %304
    %306 = vadd.xlane.f32.xlu0 %v278
    %v307 = vpop.xlane.xlu0 %306
    %308 = vadd.xlane.f32.xlu0 %v279
    %v309 = vpop.xlane.xlu0 %308
    %310 = vadd.xlane.f32.xlu0 %v280
    %v311 = vpop.xlane.xlu0 %310
    %312 = vadd.xlane.f32.xlu0 %v281
    %v313 = vpop.xlane.xlu0 %312
    %s314 = sld [smem:[#allocation2]]
    %v315 = vstv %s314
    %v316 = vadd.f32 %v283, %v315
    %v317 = vadd.f32 %v285, %v315
    %v318 = vadd.f32 %v287, %v315
    %v319 = vadd.f32 %v289, %v315
    %v320 = vadd.f32 %v291, %v315
    %v321 = vadd.f32 %v293, %v315
    %v322 = vadd.f32 %v295, %v315
    %v323 = vadd.f32 %v297, %v315
    %v324 = vadd.f32 %v299, %v315
    %v325 = vadd.f32 %v301, %v315
    %v326 = vadd.f32 %v303, %v315
    %v327 = vadd.f32 %v305, %v315
    %v328 = vadd.f32 %v307, %v315
    %v329 = vadd.f32 %v309, %v315
    %v330 = vadd.f32 %v311, %v315
    %v331 = vadd.f32 %v313, %v315
    %v348 = vlaneseq
    %v349 = vand.u32 %v348, 127
    %v350 = vlaneseq
    %v351 = vshrl.u32 %v350, 7
    %v352 = vsub.s32 %v349, %v351
    %v353 = vrot.slane %v316, %v352
    %v354 = vadd.s32 %v349, 4294967288
    %v355 = vlaneseq
    %v356 = vshrl.u32 %v355, 7
    %v357 = vsub.s32 %v354, %v356
    %v358 = vrot.slane %v317, %v357
    %vm359 = vcmask 130112
    %v360 = vsel %vm359, %v358, %v353
    %v361 = vadd.s32 %v349, 4294967280
    %v362 = vlaneseq
    %v363 = vshrl.u32 %v362, 7
    %v364 = vsub.s32 %v361, %v363
    %v365 = vrot.slane %v318, %v364
    %vm366 = vcmask 195712
    %v367 = vsel %vm366, %v365, %v360
    %v368 = vadd.s32 %v349, 4294967272
    %v369 = vlaneseq
    %v370 = vshrl.u32 %v369, 7
    %v371 = vsub.s32 %v368, %v370
    %v372 = vrot.slane %v319, %v371
    %vm373 = vcmask 261312
    %v374 = vsel %vm373, %v372, %v367
    %v375 = vadd.s32 %v349, 4294967264
    %v376 = vlaneseq
    %v377 = vshrl.u32 %v376, 7
    %v378 = vsub.s32 %v375, %v377
    %v379 = vrot.slane %v320, %v378
    %vm380 = vcmask 326912
    %v381 = vsel %vm380, %v379, %v374
    %v382 = vadd.s32 %v349, 4294967256
    %v383 = vlaneseq
    %v384 = vshrl.u32 %v383, 7
    %v385 = vsub.s32 %v382, %v384
    %v386 = vrot.slane %v321, %v385
    %vm387 = vcmask 392512
    %v388 = vsel %vm387, %v386, %v381
    %v389 = vadd.s32 %v349, 4294967248
    %v390 = vlaneseq
    %v391 = vshrl.u32 %v390, 7
    %v392 = vsub.s32 %v389, %v391
    %v393 = vrot.slane %v322, %v392
    %vm394 = vcmask 458112
    %v395 = vsel %vm394, %v393, %v388
    %v396 = vadd.s32 %v349, 4294967240
    %v397 = vlaneseq
    %v398 = vshrl.u32 %v397, 7
    %v399 = vsub.s32 %v396, %v398
    %v400 = vrot.slane %v323, %v399
    %vm401 = vcmask 523712
    %v402 = vsel %vm401, %v400, %v395
    %v403 = vadd.s32 %v349, 4294967232
    %v404 = vlaneseq
    %v405 = vshrl.u32 %v404, 7
    %v406 = vsub.s32 %v403, %v405
    %v407 = vrot.slane %v324, %v406
    %vm408 = vcmask 589312
    %v409 = vsel %vm408, %v407, %v402
    %v410 = vadd.s32 %v349, 4294967224
    %v411 = vlaneseq
    %v412 = vshrl.u32 %v411, 7
    %v413 = vsub.s32 %v410, %v412
    %v414 = vrot.slane %v325, %v413
    %vm415 = vcmask 654912
    %v416 = vsel %vm415, %v414, %v409
    %v417 = vadd.s32 %v349, 4294967216
    %v418 = vlaneseq
    %v419 = vshrl.u32 %v418, 7
    %v420 = vsub.s32 %v417, %v419
    %v421 = vrot.slane %v326, %v420
    %vm422 = vcmask 720512
    %v423 = vsel %vm422, %v421, %v416
    %v424 = vadd.s32 %v349, 4294967208
    %v425 = vlaneseq
    %v426 = vshrl.u32 %v425, 7
    %v427 = vsub.s32 %v424, %v426
    %v428 = vrot.slane %v327, %v427
    %vm429 = vcmask 786112
    %v430 = vsel %vm429, %v428, %v423
    %v431 = vadd.s32 %v349, 4294967200
    %v432 = vlaneseq
    %v433 = vshrl.u32 %v432, 7
    %v434 = vsub.s32 %v431, %v433
    %v435 = vrot.slane %v328, %v434
    %vm436 = vcmask 851712
    %v437 = vsel %vm436, %v435, %v430
    %v438 = vadd.s32 %v349, 4294967192
    %v439 = vlaneseq
    %v440 = vshrl.u32 %v439, 7
    %v441 = vsub.s32 %v438, %v440
    %v442 = vrot.slane %v329, %v441
    %vm443 = vcmask 917312
    %v444 = vsel %vm443, %v442, %v437
    %v445 = vadd.s32 %v349, 4294967184
    %v446 = vlaneseq
    %v447 = vshrl.u32 %v446, 7
    %v448 = vsub.s32 %v445, %v447
    %v449 = vrot.slane %v330, %v448
    %vm450 = vcmask 982912
    %v451 = vsel %vm450, %v449, %v444
    %v452 = vadd.s32 %v349, 4294967176
    %v453 = vlaneseq
    %v454 = vshrl.u32 %v453, 7
    %v455 = vsub.s32 %v452, %v454
    %v456 = vrot.slane %v331, %v455
    %vm457 = vcmask 1048512
    %v458 = vsel %vm457, %v456, %v451
    %460 = vst [vmem:[#allocation3] sm:$0x1] %v458
    // Predicated region
    $region22: #{tpu_custom_call.1} parent=1 // pred_check
      _
    $region23: #{tpu_custom_call.1} parent=1 // pred_check_branch
      %462 = sbr.rel (0) target = $region25
    $region24: #{tpu_custom_call.1} parent=1 // pred_region
      %s464 = ssub.s32 16, 16
      %465 = vsyncadd [#allocation4], %s464
      %s467 = sshll.u32 [#allocation3], 4
      %s468 = int_to_ptr.vmem [resolvable:$true] %s467
      %470 = dma.vmem_to_hbm [thread:$0]  %s468, 16, %s5, [#allocation4]
    $region25: #{tpu_custom_call.1} parent=1 // pred_fallthru
      _
    // Predicated region
    $region26: #{tpu_custom_call.1} parent=1 // pred_check
      _
    $region27: #{tpu_custom_call.1} parent=1 // pred_check_branch
      %472 = sbr.rel (0) target = $region29
    $region28: #{tpu_custom_call.1} parent=1 // pred_region
      %473 = dma.done [#allocation4], 16
    $region29: #{tpu_custom_call.1} parent=1 // pred_fallthru
      _
    %474 = vsyncpa [#allocation4], 1

</llo_original>
